<compile_context>
chip_gen: v7x
topology: tpu7x:2x2x1
jax: 0.10.0
libtpu: 0.0.40
codegen_flags: <defaults>
</compile_context>

<pallas_src>
import functools
import math

import jax
import jax.numpy as jnp
from jax import lax
from jax.experimental import pallas as pl
from jax.experimental.pallas import tpu as pltpu

_LANE = 128
_OUT_LANES = 128          # lane-dense output width


def _round_up(x: int, m: int) -> int:
    return (x + m - 1) // m * m


def _vmem_capacity_bytes() -> int:
    """Best-effort physical VMEM query; conservative (v7x-class) fallback."""
    try:
        return int(pltpu.get_tpu_info().vmem_capacity_bytes)
    except Exception:
        pass
    try:
        kind = jax.devices()[0].device_kind.lower()
        if any(g in kind for g in ("v4", "v5", "v6")):
            return 128 * 1024 * 1024
    except Exception:
        pass
    return 64 * 1024 * 1024


def _choose_tiles(n: int, d_pad: int, itemsize: int, vmem_cap: int):
    """(row_tile, col_tile) heuristic: MXU-friendly, megacore-friendly, VMEM-aware."""
    if n <= 256:
        t = max(8, _round_up(n, 8))
        return t, t
    small_vmem = vmem_cap < 96 * 1024 * 1024          # v7x-class (64 MiB VMEM)
    # Row tile 256: fills the 256x256 MXU, gives >=2 "parallel" row tiles for
    # the 2-TC megacore on mid-size batches, halves (tr, tc) temporaries vs 512.
    tr = 256
    # Wider col tile amortizes per-grid-step overhead / softmax epilogue; only
    # pay the larger N padding once N is big enough, and keep the streamed key
    # window (double-buffered) modest on small-VMEM chips with huge D.
    tc = 512 if n >= 1024 else 256
    if small_vmem and 2 * tc * d_pad * itemsize > 8 * 1024 * 1024:
        tc = 256
    return tr, tc


def _simclr_kernel(q_ref, k_ref, out_ref, l_ref, *,
                   tile_rows: int, tile_cols: int, inv_temp: float,
                   resident_keys: bool):
    i = pl.program_id(0)          # row-tile index ("parallel")
    k = pl.program_id(1)          # col-tile index ("arbitrary" reduction axis)
    nk = pl.num_programs(1)

    @pl.when(k == 0)
    def _init():
        l_ref[...] = jnp.zeros_like(l_ref)

    if resident_keys:
        # Whole normalized key matrix is resident in VMEM (constant index map
        # -> DMA'd from HBM exactly once); slice out this column window.
        start = pl.multiple_of(k * tile_cols, tile_cols)
        kn = k_ref[pl.ds(start, tile_cols), :]
    else:
        kn = k_ref[...]

    # (tr, tc) similarity block: contract the last dims of both operands (no
    # transposed key copy), f32 accumulation on the MXU.  1/temperature is
    # already folded into the pre-normalized query operand, so `sim` are the
    # final logits.
    sim = lax.dot_general(q_ref[...], kn, (((1,), (1,)), ((), ())),
                          preferred_element_type=jnp.float32)

    # Rows are L2-normalized and 1/T is folded into exactly one operand, so
    # every logit is <= inv_temp.  Use the static shift inv_temp instead of an
    # online running max: no max reduce, no exp rescale, no m scratch.
    p = jnp.exp(sim - inv_temp)
    l_ref[...] += jnp.sum(p, axis=-1, keepdims=True)

    # Self-similarity (diagonal) correction, emitted only on the tiles the
    # global diagonal actually crosses (a scalar predicate; the iota/compare
    # work is skipped everywhere else).
    row_lo = i * tile_rows
    col_lo = k * tile_cols
    crosses_diag = jnp.logical_and(row_lo < col_lo + tile_cols,
                                   col_lo < row_lo + tile_rows)

    @pl.when(crosses_diag)
    def _remove_diag():
        r = lax.broadcasted_iota(jnp.int32, (tile_rows, tile_cols), 0)
        c = lax.broadcasted_iota(jnp.int32, (tile_rows, tile_cols), 1)
        on_diag = (r + row_lo) == (c + col_lo)
        l_ref[...] -= jnp.sum(jnp.where(on_diag, p, 0.0), axis=-1, keepdims=True)

    @pl.when(k == nk - 1)
    def _finalize():
        # Lane-dense store of the per-row shifted softmax denominator.
        out_ref[...] = jnp.broadcast_to(l_ref[...], (tile_rows, _OUT_LANES))


def simclr_loss(z_i: jax.Array, z_j: jax.Array, temperature: float, *,
                use_bf16_matmul: bool = True,
                tile_rows: int | None = None, tile_cols: int | None = None,
                resident_keys: bool | None = None) -> jax.Array:
    assert z_i.shape == z_j.shape and z_i.ndim == 2
    b, d = z_i.shape
    n = 2 * b
    inv_temp = 1.0 / float(temperature)

    # ---- wrapper-side prep: O(N*D) work done exactly once, outside the kernel.
    z = jnp.concatenate([z_i, z_j], axis=0).astype(jnp.float32)
    norm = jnp.sqrt(jnp.sum(z * z, axis=-1, keepdims=True))
    zn = z * (1.0 / jnp.maximum(norm, 1e-8))             # f32 L2-normalized rows

    # Positive logits never touch the kernel: pos_r = <zn[r], zn[pair(r)]> / T,
    # pair(r) = (r + B) mod N.  Only their sum is needed for the reduced loss.
    # (pos uses the f32-normalized rows; the denominator uses the bf16 MXU
    # operands when use_bf16_matmul=True -- intentional precision asymmetry.)
    zn_pair = jnp.concatenate([zn[b:], zn[:b]], axis=0)
    pos_sum = jnp.sum(zn * zn_pair) * inv_temp

    matmul_dtype = jnp.bfloat16 if use_bf16_matmul else jnp.float32
    queries = (zn * inv_temp).astype(matmul_dtype)       # 1/T folded into one operand
    keys = zn.astype(matmul_dtype)                       # streamed / resident operand
    itemsize = jnp.dtype(matmul_dtype).itemsize

    d_pad = _round_up(d, _LANE)
    vmem_cap = _vmem_capacity_bytes()
    if vmem_cap >= 100 * 1024 * 1024:                    # v5e/v6e: 128 MiB physical
        vmem_limit = 96 * 1024 * 1024
    else:                                                # v7x-class: 64 MiB physical
        vmem_limit = max(32 * 1024 * 1024,
                         min(56 * 1024 * 1024, vmem_cap - 8 * 1024 * 1024))

    if tile_rows is None or tile_cols is None:
        tr_auto, tc_auto = _choose_tiles(n, d_pad, itemsize, vmem_cap)
        tile_rows = tile_rows or tr_auto
        tile_cols = tile_cols or tc_auto
    assert tile_rows % 8 == 0 and tile_cols % 8 == 0

    n_pad = _round_up(n, math.lcm(tile_rows, tile_cols))

    if resident_keys is None:
        # Full key slab gets two pipeline buffers even with a constant index
        # map, so budget 2x and keep generous headroom for everything else.
        resident_keys = 2 * n_pad * d_pad * itemsize <= vmem_limit // 3

    if (n_pad, d_pad) != (n, d):
        queries = jnp.pad(queries, ((0, n_pad - n), (0, d_pad - d)))
        keys = jnp.pad(keys, ((0, n_pad - n), (0, d_pad - d)))

    grid = (n_pad // tile_rows, n_pad // tile_cols)

    if resident_keys:
        key_spec = pl.BlockSpec((n_pad, d_pad), lambda i, k: (0, 0))
    else:
        key_spec = pl.BlockSpec((tile_cols, d_pad), lambda i, k: (k, 0))

    kernel = functools.partial(
        _simclr_kernel, tile_rows=tile_rows, tile_cols=tile_cols,
        inv_temp=inv_temp, resident_keys=resident_keys)

    out = pl.pallas_call(
        kernel,
        out_shape=jax.ShapeDtypeStruct((n_pad, _OUT_LANES), jnp.float32),
        grid_spec=pltpu.PrefetchScalarGridSpec(
            num_scalar_prefetch=0,
            grid=grid,
            in_specs=[
                pl.BlockSpec((tile_rows, d_pad), lambda i, k: (i, 0)),  # queries
                key_spec,                                               # keys
            ],
            out_specs=pl.BlockSpec((tile_rows, _OUT_LANES), lambda i, k: (i, 0)),
            scratch_shapes=[pltpu.VMEM((tile_rows, 1), jnp.float32)],   # running sum
        ),
        compiler_params=pltpu.CompilerParams(
            dimension_semantics=("parallel", "arbitrary"),
            vmem_limit_bytes=int(vmem_limit)),
    )(queries, keys)

    # ---- wrapper-side finish: cheap O(N) work.
    l = out[:n, 0]
    if n_pad != n:
        # Padded key rows are exact zeros -> each contributed exp(0 - 1/T).
        l = l - jnp.float32(n_pad - n) * jnp.exp(jnp.float32(-inv_temp))
    lse = inv_temp + jnp.log(l)                   # logsumexp over all c != r
    return (jnp.sum(lse) - pos_sum) / jnp.float32(n)


def _simclr_loss_ref(z_i, z_j, temperature):
    """Pure-JAX reference mirroring the PyTorch module."""
    bsz = z_i.shape[0]
    n = 2 * bsz
    z = jnp.concatenate([z_i, z_j], axis=0).astype(jnp.float32)
    zn = z / jnp.maximum(jnp.linalg.norm(z, axis=-1, keepdims=True), 1e-8)
    sim = (zn @ zn.T) / temperature
    idx = jnp.arange(n)
    pair = jnp.where(idx < bsz, idx + bsz, idx - bsz)
    pos = sim[idx, pair]
    sim_nd = jnp.where(jnp.eye(n, dtype=bool), -jnp.inf, sim)
    m = jnp.max(sim_nd, axis=-1, keepdims=True)
    lse = m[:, 0] + jnp.log(jnp.sum(jnp.exp(sim_nd - m), axis=-1))
    return jnp.sum(lse - pos) / n


if __name__ == "__main__":
    key = jax.random.PRNGKey(0)
    k1, k2, k3, k4, k5, k6, k7, k8 = jax.random.split(key, 8)

    # 1) Tiny single-tile grid, f32 MXU path (resident keys by heuristic).
    z_i = jax.random.normal(k1, (4, 32), jnp.float32)
    z_j = jax.random.normal(k2, (4, 32), jnp.float32)
    loss = jax.block_until_ready(simclr_loss(z_i, z_j, 0.5, use_bf16_matmul=False))
    ref = _simclr_loss_ref(z_i, z_j, 0.5)
    assert jnp.allclose(loss, ref, rtol=1e-4, atol=1e-4), (loss, ref)

    # 2) Multi-tile grid with row/col padding (N=42 -> 48), streamed-keys path.
    z_i = jax.random.normal(k3, (21, 40), jnp.float32)
    z_j = jax.random.normal(k4, (21, 40), jnp.float32)
    loss = jax.block_until_ready(
        simclr_loss(z_i, z_j, 0.2, use_bf16_matmul=False,
                    tile_rows=16, tile_cols=16, resident_keys=False))
    ref = _simclr_loss_ref(z_i, z_j, 0.2)
    assert jnp.allclose(loss, ref, rtol=1e-4, atol=1e-4), (loss, ref)

    # 3) Rectangular tiles (8 x 16) + resident key slab + padding (N=36 -> 48).
    z_i = jax.random.normal(k5, (18, 33), jnp.float32)
    z_j = jax.random.normal(k6, (18, 33), jnp.float32)
    loss = jax.block_until_ready(
        simclr_loss(z_i, z_j, 0.2, use_bf16_matmul=False,
                    tile_rows=8, tile_cols=16, resident_keys=True))
    ref = _simclr_loss_ref(z_i, z_j, 0.2)
    assert jnp.allclose(loss, ref, rtol=1e-4, atol=1e-4), (loss, ref)

    # 4) bf16 MXU operands (default perf path) -- looser tolerance.
    z_i = jax.random.normal(k7, (8, 64), jnp.float32)
    z_j = jax.random.normal(k8, (8, 64), jnp.float32)
    loss = jax.block_until_ready(simclr_loss(z_i, z_j, 0.5))
    ref = _simclr_loss_ref(z_i, z_j, 0.5)
    assert jnp.allclose(loss, ref, rtol=3e-2, atol=3e-2), (loss, ref)

    print("KERNEL_OK")
</pallas_src>

<mosaic_0001>
module attributes {stable_mosaic.version = 11 : i64} {
  func.func @_simclr_kernel(%arg0: i32, %arg1: i32, %arg2: memref<8x128xf32, #tpu.memory_space<vmem>>, %arg3: memref<8x128xf32, #tpu.memory_space<vmem>>, %arg4: memref<8x128xf32, #tpu.memory_space<vmem>>, %arg5: memref<8x1xf32, #tpu.memory_space<vmem>>) attributes {dimension_semantics = [#tpu.dimension_semantics<parallel>, #tpu.dimension_semantics<arbitrary>], iteration_bounds = array<i64: 1, 1>, scalar_prefetch = 0 : i64, scratch_operands = 1 : i64, tpu.core_type = #tpu.core_type<tc>, window_params = [{transform_indices = @transform_0, window_bounds = array<i64: 8, 128>}, {pipeline_mode = #tpu.pipeline_mode<synchronous>, transform_indices = @transform_1, window_bounds = array<i64: 8, 128>}, {transform_indices = @transform_2, window_bounds = array<i64: 8, 128>}]} {
    %c0_i32 = arith.constant 0 : i32
    %0 = arith.cmpi eq, %arg1, %c0_i32 : i32
    %1 = arith.extui %0 : i1 to i32
    %c0_i32_0 = arith.constant 0 : i32
    %2 = arith.cmpi ne, %1, %c0_i32_0 : i32
    scf.if %2 {
      %cst_16 = arith.constant 0.000000e+00 : f32
      %29 = vector.broadcast %cst_16 : f32 to vector<8x1xf32>
      %c0_17 = arith.constant 0 : index
      %c0_18 = arith.constant 0 : index
      %30 = vector.load %arg5[%c0_17, %c0_18] : memref<8x1xf32, #tpu.memory_space<vmem>>, vector<8x1xf32>
      tpu.vector_store %arg5[%c0_17, %c0_18], %29 {strides = array<i32>} : memref<8x1xf32, #tpu.memory_space<vmem>>, vector<8x1xf32>,
    } else {
    }
    %c8_i32 = arith.constant 8 : i32
    %3 = arith.muli %arg1, %c8_i32 : i32
    %4 = tpu.assume_multiple %3, 8 : i32
    %5 = arith.index_cast %4 : i32 to index
    %c0 = arith.constant 0 : index
    %6 = vector.load %arg3[%5, %c0] : memref<8x128xf32, #tpu.memory_space<vmem>>, vector<8x128xf32>
    %c0_1 = arith.constant 0 : index
    %c0_2 = arith.constant 0 : index
    %7 = vector.load %arg2[%c0_1, %c0_2] : memref<8x128xf32, #tpu.memory_space<vmem>>, vector<8x128xf32>
    %cst = arith.constant dense<0.000000e+00> : vector<8x8xf32>
    %8 = tpu.matmul %7, %6, %cst {dimension_numbers = #tpu.dot_dimension_numbers<[1], [1], [0], [0], [0, 0, 1, 0], [], []>} : vector<8x128xf32>, vector<8x128xf32>, vector<8x8xf32> -> vector<8x8xf32>
    %cst_3 = arith.constant 2.000000e+00 : f32
    %9 = vector.broadcast %cst_3 : f32 to vector<8x8xf32>
    %10 = arith.subf %8, %9 : vector<8x8xf32>
    %11 = math.exp %10 : vector<8x8xf32>
    %c0_4 = arith.constant 0 : index
    %c0_5 = arith.constant 0 : index
    %12 = vector.load %arg5[%c0_4, %c0_5] : memref<8x1xf32, #tpu.memory_space<vmem>>, vector<8x1xf32>
    %cst_6 = arith.constant dense<0.000000e+00> : vector<8xf32>
    %13 = vector.multi_reduction <add>, %11, %cst_6 [1] : vector<8x8xf32> to vector<8xf32>
    %14 = vector.shape_cast %13 : vector<8xf32> to vector<8x1xf32>
    %15 = arith.addf %12, %14 : vector<8x1xf32>
    %c0_7 = arith.constant 0 : index
    %c0_8 = arith.constant 0 : index
    %16 = vector.load %arg5[%c0_7, %c0_8] : memref<8x1xf32, #tpu.memory_space<vmem>>, vector<8x1xf32>
    tpu.vector_store %arg5[%c0_7, %c0_8], %15 {strides = array<i32>} : memref<8x1xf32, #tpu.memory_space<vmem>>, vector<8x1xf32>,
    %c8_i32_9 = arith.constant 8 : i32
    %17 = arith.muli %arg0, %c8_i32_9 : i32
    %c8_i32_10 = arith.constant 8 : i32
    %18 = arith.muli %arg1, %c8_i32_10 : i32
    %c8_i32_11 = arith.constant 8 : i32
    %19 = arith.addi %18, %c8_i32_11 : i32
    %20 = arith.cmpi slt, %17, %19 : i32
    %c8_i32_12 = arith.constant 8 : i32
    %21 = arith.addi %17, %c8_i32_12 : i32
    %22 = arith.cmpi slt, %18, %21 : i32
    %23 = arith.andi %20, %22 : i1
    %24 = arith.extui %23 : i1 to i32
    %c0_i32_13 = arith.constant 0 : i32
    %25 = arith.cmpi ne, %24, %c0_i32_13 : i32
    scf.if %25 {
      %29 = tpu.iota {dimensions = array<i32: 0>} : vector<8x8xi32>
      %30 = tpu.iota {dimensions = array<i32: 1>} : vector<8x8xi32>
      %31 = vector.broadcast %17 : i32 to vector<8x8xi32>
      %32 = arith.addi %29, %31 : vector<8x8xi32>
      %33 = vector.broadcast %18 : i32 to vector<8x8xi32>
      %34 = arith.addi %30, %33 : vector<8x8xi32>
      %35 = arith.cmpi eq, %32, %34 : vector<8x8xi32>
      %c0_16 = arith.constant 0 : index
      %c0_17 = arith.constant 0 : index
      %36 = vector.load %arg5[%c0_16, %c0_17] : memref<8x1xf32, #tpu.memory_space<vmem>>, vector<8x1xf32>
      %cst_18 = arith.constant 0.000000e+00 : f32
      %37 = vector.broadcast %cst_18 : f32 to vector<8x8xf32>
      %38 = arith.select %35, %11, %37 : vector<8x8xi1>, vector<8x8xf32>
      %cst_19 = arith.constant dense<0.000000e+00> : vector<8xf32>
      %39 = vector.multi_reduction <add>, %38, %cst_19 [1] : vector<8x8xf32> to vector<8xf32>
      %40 = vector.shape_cast %39 : vector<8xf32> to vector<8x1xf32>
      %41 = arith.subf %36, %40 : vector<8x1xf32>
      %c0_20 = arith.constant 0 : index
      %c0_21 = arith.constant 0 : index
      %42 = vector.load %arg5[%c0_20, %c0_21] : memref<8x1xf32, #tpu.memory_space<vmem>>, vector<8x1xf32>
      tpu.vector_store %arg5[%c0_20, %c0_21], %41 {strides = array<i32>} : memref<8x1xf32, #tpu.memory_space<vmem>>, vector<8x1xf32>,
    } else {
    }
    %c0_i32_14 = arith.constant 0 : i32
    %26 = arith.cmpi eq, %arg1, %c0_i32_14 : i32
    %27 = arith.extui %26 : i1 to i32
    %c0_i32_15 = arith.constant 0 : i32
    %28 = arith.cmpi ne, %27, %c0_i32_15 : i32
    scf.if %28 {
      %c0_16 = arith.constant 0 : index
      %c0_17 = arith.constant 0 : index
      %29 = vector.load %arg5[%c0_16, %c0_17] : memref<8x1xf32, #tpu.memory_space<vmem>>, vector<8x1xf32>
      %30 = vector.shape_cast %29 : vector<8x1xf32> to vector<8x1xf32>
      %31 = vector.broadcast %30 : vector<8x1xf32> to vector<8x128xf32>
      %c0_18 = arith.constant 0 : index
      %c0_19 = arith.constant 0 : index
      %32 = vector.load %arg4[%c0_18, %c0_19] : memref<8x128xf32, #tpu.memory_space<vmem>>, vector<8x128xf32>
      tpu.vector_store %arg4[%c0_18, %c0_19], %31 {strides = array<i32>} : memref<8x128xf32, #tpu.memory_space<vmem>>, vector<8x128xf32>,
    } else {
    }
    return
  }
  func.func @transform_0(%arg0: i32, %arg1: i32) -> (i32, i32) {
    %c0_i32 = arith.constant 0 : i32
    %c0_i32_0 = arith.constant 0 : i32
    return %arg0, %c0_i32 : i32, i32
  }
  func.func @transform_1(%arg0: i32, %arg1: i32) -> (i32, i32) {
    %c0_i32 = arith.constant 0 : i32
    %c0_i32_0 = arith.constant 0 : i32
    %c0_i32_1 = arith.constant 0 : i32
    return %c0_i32, %c0_i32_0 : i32, i32
  }
  func.func @transform_2(%arg0: i32, %arg1: i32) -> (i32, i32) {
    %c0_i32 = arith.constant 0 : i32
    %c0_i32_0 = arith.constant 0 : i32
    return %arg0, %c0_i32 : i32, i32
  }
}

</mosaic_0001>

<llo_original>
// kernel: tpu_custom_call.1
$region0: #{tpu_custom_call.1}
  #allocation0 [shape = 'u32[]', space=smem, size = 0x4, offset = 0x4, fixed_abs, tag = 'smem constant byte address 0x4 - core index']
  #allocation1 [shape = 'u32[144,128]{1,0:T(1,128)}', space=vmem, size = 0x12000, scoped, tag = 'internal scratch']
  #allocation2 [shape = 'f32[8,1]{1,0:T(8,128)}', space=vmem, size = 0x1000, scoped, tag = 'scratch operand']
  %s0 = inlined_call_operand.hbm [shape: f32[8,128], index: 0, kind: input, shape index: {}]
  %s1 = inlined_call_operand.hbm [shape: f32[8,128], index: 1, kind: input, shape index: {}]
  %s2 = inlined_call_operand.hbm [shape: f32[8,128], index: 2, kind: output, shape index: {}]
  %s3 = sld [smem:[#allocation0]]
  $region38: #{tpu_custom_call.1} parent=0
    _
  %s5 = ssub.s32 1, %s3
  %s6 = scalar_select 0, %s5, %s3
  $region1: #{tpu_custom_call.1} parent=0
    #allocation3 [shape = 'u8[4096]{0}', space=vmem, size = 0x1000, scoped, tag = 'input window, operand 0, single buffered']
    #allocation4 [shape = 's32[1]{0}', space=sflag, size = 0x4, scoped, tag = 'scoped memory for tpu_custom_call.1']
    #allocation5 [shape = 's32[1]{0}', space=sflag, size = 0x4, scoped, tag = 'scoped memory for tpu_custom_call.1']
    #allocation6 [shape = 'u8[4096]{0}', space=vmem, size = 0x1000, scoped, tag = 'input window, operand 1, single buffered']
    #allocation7 [shape = 's32[1]{0}', space=sflag, size = 0x4, scoped, tag = 'scoped memory for tpu_custom_call.1']
    #allocation8 [shape = 'u8[4096]{0}', space=vmem, size = 0x1000, scoped, tag = 'output window, operand 0, single buffered']
    %7 = vsyncpa [#allocation4], 0
    %8 = vsyncpa [#allocation7], 0
    %9 = vsyncpa [#allocation5], 0
    // Predicated region
    $region2: #{tpu_custom_call.1} parent=1 // pred_check
      _
    $region3: #{tpu_custom_call.1} parent=1 // pred_check_branch
      %11 = sbr.rel (0) target = $region5
    $region4: #{tpu_custom_call.1} parent=1 // pred_region
      %s13 = ssub.s32 128, 128
      %14 = vsyncadd [#allocation4], %s13
      %s16 = sshll.u32 [#allocation3], 4
      %s17 = int_to_ptr.vmem [resolvable:$true] %s16
      %19 = dma.hbm_to_vmem [thread:$0]  %s0, 128, %s17, [#allocation4]
    $region5: #{tpu_custom_call.1} parent=1 // pred_fallthru
      _
    // Predicated region
    $region6: #{tpu_custom_call.1} parent=1 // pred_check
      _
    $region7: #{tpu_custom_call.1} parent=1 // pred_check_branch
      %21 = sbr.rel (0) target = $region9
    $region8: #{tpu_custom_call.1} parent=1 // pred_region
      %s23 = ssub.s32 128, 128
      %24 = vsyncadd [#allocation7], %s23
      %s26 = sshll.u32 [#allocation6], 4
      %s27 = int_to_ptr.vmem [resolvable:$true] %s26
      %29 = dma.hbm_to_vmem [thread:$0]  %s1, 128, %s27, [#allocation7]
    $region9: #{tpu_custom_call.1} parent=1 // pred_fallthru
      _
    // Predicated region
    $region10: #{tpu_custom_call.1} parent=1 // pred_check
      _
    $region11: #{tpu_custom_call.1} parent=1 // pred_check_branch
      %31 = sbr.rel (0) target = $region13
    $region12: #{tpu_custom_call.1} parent=1 // pred_region
      %32 = dma.done [#allocation4], 128
    $region13: #{tpu_custom_call.1} parent=1 // pred_fallthru
      _
    // Predicated region
    $region14: #{tpu_custom_call.1} parent=1 // pred_check
      _
    $region15: #{tpu_custom_call.1} parent=1 // pred_check_branch
      %34 = sbr.rel (0) target = $region17
    $region16: #{tpu_custom_call.1} parent=1 // pred_region
      %35 = dma.done [#allocation7], 128
    $region17: #{tpu_custom_call.1} parent=1 // pred_fallthru
      _
    %p36 = scmp.eq.s32.totalorder 0, 0
    // Predicated region
    $region18: #{tpu_custom_call.1} parent=1 // pred_check
      %p37 = pneg %p36
    $region19: #{tpu_custom_call.1} parent=1 // pred_check_branch
      %39 = sbr.rel (%p37) target = $region21
    $region20: #{tpu_custom_call.1} parent=1 // pred_region
      %vm40 = vcmask 7168
      %41 = vst.msk [vmem:[#allocation2] sm:$0xff] %vm40, 0.0
    $region21: #{tpu_custom_call.1} parent=1 // pred_fallthru
      _
    %s42 = smul.u32 0, 8
    %s43 = scalar_lea.vmem [#allocation6], %s42
    %v44 = vld [vmem:[%s43] sm:$0xff]
    %v45 = vld [vmem:[#allocation3] sm:$0xff]
    %46 = vmatprep.subr.mxu0 0.0
    %47 = vmatpush1.xpose.msra.mxu0 %v44
    %48 = vmatprep.subr.mxu0 0.0
    %49 = vmatpush1.xpose.msra.mxu0 0.0
    %50 = vmatprep.subr.mxu0 0.0
    %51 = vmatpush1.xpose.msra.mxu0 0.0
    %52 = vmatprep.subr.mxu0 0.0
    %53 = vmatpush1.xpose.msra.mxu0 0.0
    %54 = vmatprep.subr.mxu0 0.0
    %55 = vmatpush1.xpose.msra.mxu0 0.0
    %56 = vmatprep.subr.mxu0 0.0
    %57 = vmatpush1.xpose.msra.mxu0 0.0
    %58 = vmatprep.subr.mxu0 0.0
    %59 = vmatpush1.xpose.msra.mxu0 0.0
    %60 = vmatprep.subr.mxu0 0.0
    %61 = vmatpush1.xpose.msra.mxu0 0.0
    %62 = vmatprep.subr.mxu0 0.0
    %63 = vmatpush1.xpose.msra.mxu0 0.0
    %64 = vmatprep.subr.mxu0 0.0
    %65 = vmatpush1.xpose.msra.mxu0 0.0
    %66 = vmatprep.subr.mxu0 0.0
    %67 = vmatpush1.xpose.msra.mxu0 0.0
    %68 = vmatprep.subr.mxu0 0.0
    %69 = vmatpush1.xpose.msra.mxu0 0.0
    %70 = vmatprep.subr.mxu0 0.0
    %71 = vmatpush1.xpose.msra.mxu0 0.0
    %72 = vmatprep.subr.mxu0 0.0
    %73 = vmatpush1.xpose.msra.mxu0 0.0
    %74 = vmatprep.subr.mxu0 0.0
    %75 = vmatpush1.xpose.msra.mxu0 0.0
    %76 = vmatprep.subr.mxu0 0.0
    %77 = vmatpush1.xpose.msra.mxu0 0.0
    %78 = vmatprep.subr.mxu0 0.0
    %79 = vmatpush1.xpose.msra.mxu0 0.0
    %80 = vmatprep.subr.mxu0 0.0
    %81 = vmatpush1.xpose.msra.mxu0 0.0
    %82 = vmatprep.subr.mxu0 0.0
    %83 = vmatpush1.xpose.msra.mxu0 0.0
    %84 = vmatprep.subr.mxu0 0.0
    %85 = vmatpush1.xpose.msra.mxu0 0.0
    %86 = vmatprep.subr.mxu0 0.0
    %87 = vmatpush1.xpose.msra.mxu0 0.0
    %88 = vmatprep.subr.mxu0 0.0
    %89 = vmatpush1.xpose.msra.mxu0 0.0
    %90 = vmatprep.subr.mxu0 0.0
    %91 = vmatpush1.xpose.msra.mxu0 0.0
    %92 = vmatprep.subr.mxu0 0.0
    %93 = vmatpush1.xpose.msra.mxu0 0.0
    %94 = vmatprep.subr.mxu0 0.0
    %95 = vmatpush1.xpose.msra.mxu0 0.0
    %96 = vmatprep.subr.mxu0 0.0
    %97 = vmatpush1.xpose.msra.mxu0 0.0
    %98 = vmatprep.subr.mxu0 0.0
    %99 = vmatpush1.xpose.msra.mxu0 0.0
    %100 = vmatprep.subr.mxu0 0.0
    %101 = vmatpush1.xpose.msra.mxu0 0.0
    %102 = vmatprep.subr.mxu0 0.0
    %103 = vmatpush1.xpose.msra.mxu0 0.0
    %104 = vmatprep.subr.mxu0 0.0
    %105 = vmatpush1.xpose.msra.mxu0 0.0
    %106 = vmatprep.subr.mxu0 0.0
    %107 = vmatpush1.xpose.msra.mxu0 0.0
    %108 = vmatprep.subr.mxu0 0.0
    %109 = vmatpush1.xpose.msra.mxu0 0.0
    %110 = vmatprep.mubr.f32.mxu0 0.0
    %111 = vmatmul.mubr.f32.gmra.mrb[0].mxu0 %v45
    %v112 = vpop.f32.mrb[0].mxu0
    %v113 = vadd.f32 0.0, %v112
    %v114 = vpop.f32.mrb[0].mxu0
    %115 = vdwg.mxu0
    %v116 = vsub.f32 %v113, 2.0
    %v117 = vmul.f32 %v116, 1.442695
    %v118 = vpow.pop %v117
    %v119 = vld [vmem:[#allocation2] sm:$0xff]
    %vm120 = vcmask 64512
    %v121 = vsel %vm120, %v118, 0.0
    %122 = vadd.xlane.f32.xlu0 %v121
    %v123 = vpop.xlane.xlu0 %122
    %v124 = vadd.f32 %v119, %v123
    %vm125 = vcmask 7168
    %126 = vst.msk [vmem:[#allocation2] sm:$0xff] %vm125, %v124
    %s127 = smul.u32 0, 8
    %s128 = sadd.s32 %s42, 8
    %p129 = scmp.lt.s32.totalorder %s127, %s128
    %s130 = sadd.s32 %s127, 8
    %p131 = scmp.lt.s32.totalorder %s42, %s130
    %p132 = pnand %p129, %p131
    %p133 = pneg %p132
    // Predicated region
    $region22: #{tpu_custom_call.1} parent=1 // pred_check
      _
    $region23: #{tpu_custom_call.1} parent=1 // pred_check_branch
      %135 = sbr.rel (%p132) target = $region25
    $region24: #{tpu_custom_call.1} parent=1 // pred_region
      %v136 = vlaneseq
      %v137 = vshrl.u32 %v136, 7
      %v138 = vlaneseq
      %v139 = vand.u32 %v138, 127
      %v140 = vstv %s127
      %v141 = vadd.s32 %v137, %v140
      %v142 = vstv %s42
      %v143 = vadd.s32 %v139, %v142
      %vm144 = vcmp.eq.s32.totalorder %v141, %v143
      %v145 = vld [vmem:[#allocation2] sm:$0xff]
      %v146 = vsel %vm144, %v118, 0.0
      %v147 = vsel %vm120, %v146, 0.0
      %148 = vadd.xlane.f32.xlu0 %v147
      %v149 = vpop.xlane.xlu0 %148
      %v150 = vsub.f32 %v145, %v149
      %151 = vst.msk [vmem:[#allocation2] sm:$0xff] %vm125, %v150
    $region25: #{tpu_custom_call.1} parent=1 // pred_fallthru
      _
    // Predicated region
    $region26: #{tpu_custom_call.1} parent=1 // pred_check
      %p152 = pneg %p36
    $region27: #{tpu_custom_call.1} parent=1 // pred_check_branch
      %154 = sbr.rel (%p152) target = $region29
    $region28: #{tpu_custom_call.1} parent=1 // pred_region
      %v155 = vld [vmem:[#allocation2] sm:$0xff]
      %157 = vset.pattern.permute.xlu0 0
      %158 = vperm.xlu0 %157, %v155
      %v159 = vpop.permute.xlu0 %158
      %161 = vst [vmem:[#allocation8] sm:$0xff] %v159
    $region29: #{tpu_custom_call.1} parent=1 // pred_fallthru
      _
    // Predicated region
    $region30: #{tpu_custom_call.1} parent=1 // pred_check
      _
    $region31: #{tpu_custom_call.1} parent=1 // pred_check_branch
      %163 = sbr.rel (0) target = $region33
    $region32: #{tpu_custom_call.1} parent=1 // pred_region
      %s165 = ssub.s32 128, 128
      %166 = vsyncadd [#allocation5], %s165
      %s168 = sshll.u32 [#allocation8], 4
      %s169 = int_to_ptr.vmem [resolvable:$true] %s168
      %171 = dma.vmem_to_hbm [thread:$0]  %s169, 128, %s2, [#allocation5]
    $region33: #{tpu_custom_call.1} parent=1 // pred_fallthru
      _
    // Predicated region
    $region34: #{tpu_custom_call.1} parent=1 // pred_check
      _
    $region35: #{tpu_custom_call.1} parent=1 // pred_check_branch
      %173 = sbr.rel (0) target = $region37
    $region36: #{tpu_custom_call.1} parent=1 // pred_region
      %174 = dma.done [#allocation5], 128
    $region37: #{tpu_custom_call.1} parent=1 // pred_fallthru
      _
    %175 = vsyncpa [#allocation4], 1
    %176 = vsyncpa [#allocation7], 1
    %177 = vsyncpa [#allocation5], 1

</llo_original>
